<compile_context>
chip_gen: v6e
topology: v6e:2x2x1
jax: 0.10.0
libtpu: 0.0.40
codegen_flags: <defaults>
</compile_context>

<pallas_src>
import jax
import jax.numpy as jnp
from jax import lax
from jax.experimental import pallas as pl
from jax.experimental.pallas import tpu as pltpu

RHO = 0.01        # ADMM penalty parameter
LAM = 0.01        # soft-threshold level of the prox step
NUM_ITERS = 8     # fixed-point iterations (solver1 iteration budget)
LANES = 128       # TPU lane width
CHUNK_ROWS = 16   # compute chunk: 16 sublanes x 128 lanes = 2 f32 vregs / channel


def _csum(a):
    """Sum over the leading (channel) axis as an unrolled chain of full-vreg adds."""
    acc = a[0]
    for c in range(1, a.shape[0]):
        acc = acc + a[c]
    return acc


def _admm_fixed_point_kernel(x_ref, phi_ref, psum_ref, z_out_ref):
    # Block shapes: x/phi/out (1, C, S, 128); psum (1, 1, S, 128).
    S = x_ref.shape[2]
    chunk = CHUNK_ROWS if S > CHUNK_ROWS else S   # S is a multiple of CHUNK_ROWS
    n_chunks = S // chunk

    def process(r0):
        x = x_ref[0, :, pl.ds(r0, chunk), :].astype(jnp.float32)        # (C, chunk, 128)
        phi = phi_ref[0, :, pl.ds(r0, chunk), :].astype(jnp.float32)    # (C, chunk, 128)
        psum = psum_ref[0, 0, pl.ds(r0, chunk), :].astype(jnp.float32)  # (chunk, 128)

        # Loop-invariant setup (once per chunk).
        inv_denom = pl.reciprocal(psum + RHO, approx=False)  # (chunk, 128)
        phi_s = phi * inv_denom                              # Phi / (Phi_sum + rho)
        y = _csum(phi * x)                                   # measurement, (chunk, 128)

        # Peeled iteration 0 (z0 = u0 = 0):  xk0 = phi_s * y,  w0 = xk0 - u0 = xk0.
        w0 = phi_s * y                                       # (C, chunk, 128)

        def body(_, w):
            # z' = w - t, u' = -t  (exact rewrite of the prox / dual update)
            t = jnp.clip(w, -LAM, LAM)
            v = w - (t + t)                                  # v = z' + u' = w - 2t
            yb = _csum(phi * v)
            xk = v + phi_s * (y - yb)
            return xk + t                                    # w_next = xk - u' = xk + t

        w = lax.fori_loop(0, NUM_ITERS - 1, body, w0, unroll=True)
        z = w - jnp.clip(w, -LAM, LAM)                       # final soft threshold
        z_out_ref[0, :, pl.ds(r0, chunk), :] = z.astype(z_out_ref.dtype)

    if n_chunks == 1:
        process(0)
    else:
        def chunk_body(ci, carry):
            process(pl.multiple_of(ci * chunk, chunk))
            return carry
        # unroll=2 lets the scheduler overlap the next chunk's vld with the
        # tail of the current chunk's arithmetic.
        lax.fori_loop(0, n_chunks, chunk_body, 0, unroll=2)


def deq_fixed_point_admm(x, phi, phi_sum, *, block_rows=512,
                         vmem_limit_bytes=32 << 20, cast_phi_to_bf16=False):
    """x, phi: [B, C, H, W]; phi_sum: [B, H, W].  Returns z: [B, C, H, W]."""
    B, C, H, W = x.shape
    HW = H * W

    rows = pl.cdiv(HW, LANES)                       # spatial rows of 128 lanes
    rows_p = pl.cdiv(rows, CHUNK_ROWS) * CHUNK_ROWS  # minimal pad only (<=15 rows)
    HW_p = rows_p * LANES

    # Native-dtype reshape; zero-pad the flattened spatial axis only if needed
    # (perf-sized shapes with HW % 2048 == 0 take the copy-free path).
    x_f = x.reshape(B, C, HW)
    phi_f = phi.reshape(B, C, HW)
    psum_f = phi_sum.reshape(B, 1, HW)
    if HW_p != HW:
        pad = ((0, 0), (0, 0), (0, HW_p - HW))
        x_f = jnp.pad(x_f, pad)
        phi_f = jnp.pad(phi_f, pad)
        psum_f = jnp.pad(psum_f, pad)
    x_f = x_f.reshape(B, C, rows_p, LANES)
    phi_f = phi_f.reshape(B, C, rows_p, LANES)
    psum_f = psum_f.reshape(B, 1, rows_p, LANES)
    if cast_phi_to_bf16:
        # Binary mask (and its integer channel counts) are exact in bf16;
        # cuts ~1/3 of input HBM bytes (mainly a v5e win).
        phi_f = phi_f.astype(jnp.bfloat16)
        psum_f = psum_f.astype(jnp.bfloat16)

    # Block size: multiple of CHUNK_ROWS that exactly divides rows_p (no
    # partial blocks, no wasted compute beyond the <=15 padded rows).
    target = max(CHUNK_ROWS, min(block_rows, rows_p))
    if B == 1 and rows_p >= 2 * CHUNK_ROWS:
        # Keep >= 2 grid steps along the parallel axes so both v7x TCs get work.
        target = min(target, ((rows_p // 2) // CHUNK_ROWS) * CHUNK_ROWS)
    target = max(CHUNK_ROWS, (target // CHUNK_ROWS) * CHUNK_ROWS)
    s_blk = target
    while rows_p % s_blk != 0:
        s_blk -= CHUNK_ROWS

    grid = (B, rows_p // s_blk)
    z4 = pl.pallas_call(
        _admm_fixed_point_kernel,
        out_shape=jax.ShapeDtypeStruct((B, C, rows_p, LANES), x.dtype),
        grid_spec=pltpu.PrefetchScalarGridSpec(
            num_scalar_prefetch=0,
            grid=grid,
            in_specs=[
                pl.BlockSpec((1, C, s_blk, LANES), lambda b, s: (b, 0, s, 0)),
                pl.BlockSpec((1, C, s_blk, LANES), lambda b, s: (b, 0, s, 0)),
                pl.BlockSpec((1, 1, s_blk, LANES), lambda b, s: (b, 0, s, 0)),
            ],
            out_specs=pl.BlockSpec((1, C, s_blk, LANES), lambda b, s: (b, 0, s, 0)),
        ),
        compiler_params=pltpu.CompilerParams(
            dimension_semantics=("parallel", "parallel"),
            vmem_limit_bytes=vmem_limit_bytes),
    )(x_f, phi_f, psum_f)

    if HW_p != HW:
        return z4.reshape(B, C, HW_p)[:, :, :HW].reshape(B, C, H, W)
    return z4.reshape(B, C, H, W)


def _reference(x, phi, phi_sum):
    """Pure-JAX reference of the original fixed-point iteration (sanity check)."""
    y = jnp.sum(phi * x, axis=1, keepdims=True)
    denom = phi_sum[:, None] + RHO
    z = jnp.zeros_like(x)
    u = jnp.zeros_like(x)
    for _ in range(NUM_ITERS):
        v = z + u
        yb = jnp.sum(phi * v, axis=1, keepdims=True)
        xk = v + phi * ((y - yb) / denom)
        w = xk - u
        z = jnp.sign(w) * jnp.maximum(jnp.abs(w) - LAM, 0.0)
        u = u + (z - xk)
    return z


def _run_case(key, B, C, H, W):
    kx, kp = jax.random.split(key)
    x = jax.random.normal(kx, (B, C, H, W), dtype=jnp.float32)
    phi = jax.random.bernoulli(kp, 0.5, (B, C, H, W)).astype(jnp.float32)
    phi_sum = jnp.sum(phi * phi, axis=1)  # [B, H, W]

    z = deq_fixed_point_admm(x, phi, phi_sum)
    z = jax.block_until_ready(z)

    z_ref = _reference(x, phi, phi_sum)
    assert z.shape == (B, C, H, W)
    # The u' = -clip(w) rewrite is algebraically exact but changes rounding
    # order slightly vs. the reference; 1e-4 still catches any semantic bug.
    assert jnp.max(jnp.abs(z - z_ref)) < 1e-4


if __name__ == "__main__":
    key = jax.random.PRNGKey(0)
    k1, k2, k3 = jax.random.split(key, 3)

    # Small shape from the spec (single-chunk path, minimal padding).
    _run_case(k1, 2, 4, 16, 16)
    # Shape exercising padding, the multi-chunk in-kernel loop.
    _run_case(k2, 2, 4, 48, 48)
    # B == 1: exercises the v7x grid-occupancy cap (>= 2 row blocks).
    _run_case(k3, 1, 4, 64, 64)

    print("KERNEL_OK")
</pallas_src>

<mosaic_0001>
module attributes {stable_mosaic.version = 11 : i64} {
  func.func @_admm_fixed_point_kernel(%arg0: i32, %arg1: i32, %arg2: memref<1x4x16x128xf32, #tpu.memory_space<vmem>>, %arg3: memref<1x4x16x128xf32, #tpu.memory_space<vmem>>, %arg4: memref<1x1x16x128xf32, #tpu.memory_space<vmem>>, %arg5: memref<1x4x16x128xf32, #tpu.memory_space<vmem>>) attributes {dimension_semantics = [#tpu.dimension_semantics<parallel>, #tpu.dimension_semantics<parallel>], iteration_bounds = array<i64: 2, 1>, scalar_prefetch = 0 : i64, scratch_operands = 0 : i64, tpu.core_type = #tpu.core_type<tc>, window_params = [{transform_indices = @transform_0, window_bounds = array<i64: 1, 4, 16, 128>}, {transform_indices = @transform_1, window_bounds = array<i64: 1, 4, 16, 128>}, {transform_indices = @transform_2, window_bounds = array<i64: 1, 1, 16, 128>}, {transform_indices = @transform_3, window_bounds = array<i64: 1, 4, 16, 128>}]} {
    %c0 = arith.constant 0 : index
    %c0_0 = arith.constant 0 : index
    %c0_1 = arith.constant 0 : index
    %c0_2 = arith.constant 0 : index
    %0 = vector.load %arg2[%c0, %c0_0, %c0_1, %c0_2] : memref<1x4x16x128xf32, #tpu.memory_space<vmem>>, vector<1x4x16x128xf32>
    %1 = vector.shape_cast %0 : vector<1x4x16x128xf32> to vector<4x16x128xf32>
    %c0_3 = arith.constant 0 : index
    %c0_4 = arith.constant 0 : index
    %c0_5 = arith.constant 0 : index
    %c0_6 = arith.constant 0 : index
    %2 = vector.load %arg3[%c0_3, %c0_4, %c0_5, %c0_6] : memref<1x4x16x128xf32, #tpu.memory_space<vmem>>, vector<1x4x16x128xf32>
    %3 = vector.shape_cast %2 : vector<1x4x16x128xf32> to vector<4x16x128xf32>
    %c0_7 = arith.constant 0 : index
    %c0_8 = arith.constant 0 : index
    %c0_9 = arith.constant 0 : index
    %c0_10 = arith.constant 0 : index
    %4 = vector.load %arg4[%c0_7, %c0_8, %c0_9, %c0_10] : memref<1x1x16x128xf32, #tpu.memory_space<vmem>>, vector<1x1x16x128xf32>
    %5 = vector.shape_cast %4 : vector<1x1x16x128xf32> to vector<16x128xf32>
    %cst = arith.constant 0.00999999977 : f32
    %6 = vector.broadcast %cst : f32 to vector<16x128xf32>
    %7 = arith.addf %5, %6 : vector<16x128xf32>
    %8 = tpu.reciprocal %7 : vector<16x128xf32> -> vector<16x128xf32>
    %9 = vector.shape_cast %8 : vector<16x128xf32> to vector<1x16x128xf32>
    %10 = vector.broadcast %9 : vector<1x16x128xf32> to vector<4x16x128xf32>
    %11 = arith.mulf %3, %10 : vector<4x16x128xf32>
    %12 = arith.mulf %3, %1 : vector<4x16x128xf32>
    %13 = vector.extract_strided_slice %12 {offsets = [0, 0, 0], sizes = [1, 16, 128], strides = [1, 1, 1]} : vector<4x16x128xf32> to vector<1x16x128xf32>
    %14 = vector.shape_cast %13 : vector<1x16x128xf32> to vector<16x128xf32>
    %15 = vector.extract_strided_slice %12 {offsets = [1, 0, 0], sizes = [1, 16, 128], strides = [1, 1, 1]} : vector<4x16x128xf32> to vector<1x16x128xf32>
    %16 = vector.shape_cast %15 : vector<1x16x128xf32> to vector<16x128xf32>
    %17 = arith.addf %14, %16 : vector<16x128xf32>
    %18 = vector.extract_strided_slice %12 {offsets = [2, 0, 0], sizes = [1, 16, 128], strides = [1, 1, 1]} : vector<4x16x128xf32> to vector<1x16x128xf32>
    %19 = vector.shape_cast %18 : vector<1x16x128xf32> to vector<16x128xf32>
    %20 = arith.addf %17, %19 : vector<16x128xf32>
    %21 = vector.extract_strided_slice %12 {offsets = [3, 0, 0], sizes = [1, 16, 128], strides = [1, 1, 1]} : vector<4x16x128xf32> to vector<1x16x128xf32>
    %22 = vector.shape_cast %21 : vector<1x16x128xf32> to vector<16x128xf32>
    %23 = arith.addf %20, %22 : vector<16x128xf32>
    %24 = vector.shape_cast %23 : vector<16x128xf32> to vector<1x16x128xf32>
    %25 = vector.broadcast %24 : vector<1x16x128xf32> to vector<4x16x128xf32>
    %26 = arith.mulf %11, %25 : vector<4x16x128xf32>
    %c0_i32 = arith.constant 0 : i32
    %cst_11 = arith.constant -0.00999999977 : f32
    %cst_12 = arith.constant 0.00999999977 : f32
    %27 = vector.broadcast %cst_11 : f32 to vector<4x16x128xf32>
    %28 = arith.maximumf %27, %26 : vector<4x16x128xf32>
    %29 = vector.broadcast %cst_12 : f32 to vector<4x16x128xf32>
    %30 = arith.minimumf %29, %28 : vector<4x16x128xf32>
    %31 = arith.addf %30, %30 : vector<4x16x128xf32>
    %32 = arith.subf %26, %31 : vector<4x16x128xf32>
    %33 = arith.mulf %3, %32 : vector<4x16x128xf32>
    %34 = vector.extract_strided_slice %33 {offsets = [0, 0, 0], sizes = [1, 16, 128], strides = [1, 1, 1]} : vector<4x16x128xf32> to vector<1x16x128xf32>
    %35 = vector.shape_cast %34 : vector<1x16x128xf32> to vector<16x128xf32>
    %36 = vector.extract_strided_slice %33 {offsets = [1, 0, 0], sizes = [1, 16, 128], strides = [1, 1, 1]} : vector<4x16x128xf32> to vector<1x16x128xf32>
    %37 = vector.shape_cast %36 : vector<1x16x128xf32> to vector<16x128xf32>
    %38 = arith.addf %35, %37 : vector<16x128xf32>
    %39 = vector.extract_strided_slice %33 {offsets = [2, 0, 0], sizes = [1, 16, 128], strides = [1, 1, 1]} : vector<4x16x128xf32> to vector<1x16x128xf32>
    %40 = vector.shape_cast %39 : vector<1x16x128xf32> to vector<16x128xf32>
    %41 = arith.addf %38, %40 : vector<16x128xf32>
    %42 = vector.extract_strided_slice %33 {offsets = [3, 0, 0], sizes = [1, 16, 128], strides = [1, 1, 1]} : vector<4x16x128xf32> to vector<1x16x128xf32>
    %43 = vector.shape_cast %42 : vector<1x16x128xf32> to vector<16x128xf32>
    %44 = arith.addf %41, %43 : vector<16x128xf32>
    %45 = arith.subf %23, %44 : vector<16x128xf32>
    %46 = vector.shape_cast %45 : vector<16x128xf32> to vector<1x16x128xf32>
    %47 = vector.broadcast %46 : vector<1x16x128xf32> to vector<4x16x128xf32>
    %48 = arith.mulf %11, %47 : vector<4x16x128xf32>
    %49 = arith.addf %32, %48 : vector<4x16x128xf32>
    %50 = arith.addf %49, %30 : vector<4x16x128xf32>
    %c1_i32 = arith.constant 1 : i32
    %cst_13 = arith.constant -0.00999999977 : f32
    %cst_14 = arith.constant 0.00999999977 : f32
    %51 = vector.broadcast %cst_13 : f32 to vector<4x16x128xf32>
    %52 = arith.maximumf %51, %50 : vector<4x16x128xf32>
    %53 = vector.broadcast %cst_14 : f32 to vector<4x16x128xf32>
    %54 = arith.minimumf %53, %52 : vector<4x16x128xf32>
    %55 = arith.addf %54, %54 : vector<4x16x128xf32>
    %56 = arith.subf %50, %55 : vector<4x16x128xf32>
    %57 = arith.mulf %3, %56 : vector<4x16x128xf32>
    %58 = vector.extract_strided_slice %57 {offsets = [0, 0, 0], sizes = [1, 16, 128], strides = [1, 1, 1]} : vector<4x16x128xf32> to vector<1x16x128xf32>
    %59 = vector.shape_cast %58 : vector<1x16x128xf32> to vector<16x128xf32>
    %60 = vector.extract_strided_slice %57 {offsets = [1, 0, 0], sizes = [1, 16, 128], strides = [1, 1, 1]} : vector<4x16x128xf32> to vector<1x16x128xf32>
    %61 = vector.shape_cast %60 : vector<1x16x128xf32> to vector<16x128xf32>
    %62 = arith.addf %59, %61 : vector<16x128xf32>
    %63 = vector.extract_strided_slice %57 {offsets = [2, 0, 0], sizes = [1, 16, 128], strides = [1, 1, 1]} : vector<4x16x128xf32> to vector<1x16x128xf32>
    %64 = vector.shape_cast %63 : vector<1x16x128xf32> to vector<16x128xf32>
    %65 = arith.addf %62, %64 : vector<16x128xf32>
    %66 = vector.extract_strided_slice %57 {offsets = [3, 0, 0], sizes = [1, 16, 128], strides = [1, 1, 1]} : vector<4x16x128xf32> to vector<1x16x128xf32>
    %67 = vector.shape_cast %66 : vector<1x16x128xf32> to vector<16x128xf32>
    %68 = arith.addf %65, %67 : vector<16x128xf32>
    %69 = arith.subf %23, %68 : vector<16x128xf32>
    %70 = vector.shape_cast %69 : vector<16x128xf32> to vector<1x16x128xf32>
    %71 = vector.broadcast %70 : vector<1x16x128xf32> to vector<4x16x128xf32>
    %72 = arith.mulf %11, %71 : vector<4x16x128xf32>
    %73 = arith.addf %56, %72 : vector<4x16x128xf32>
    %74 = arith.addf %73, %54 : vector<4x16x128xf32>
    %c2_i32 = arith.constant 2 : i32
    %cst_15 = arith.constant -0.00999999977 : f32
    %cst_16 = arith.constant 0.00999999977 : f32
    %75 = vector.broadcast %cst_15 : f32 to vector<4x16x128xf32>
    %76 = arith.maximumf %75, %74 : vector<4x16x128xf32>
    %77 = vector.broadcast %cst_16 : f32 to vector<4x16x128xf32>
    %78 = arith.minimumf %77, %76 : vector<4x16x128xf32>
    %79 = arith.addf %78, %78 : vector<4x16x128xf32>
    %80 = arith.subf %74, %79 : vector<4x16x128xf32>
    %81 = arith.mulf %3, %80 : vector<4x16x128xf32>
    %82 = vector.extract_strided_slice %81 {offsets = [0, 0, 0], sizes = [1, 16, 128], strides = [1, 1, 1]} : vector<4x16x128xf32> to vector<1x16x128xf32>
    %83 = vector.shape_cast %82 : vector<1x16x128xf32> to vector<16x128xf32>
    %84 = vector.extract_strided_slice %81 {offsets = [1, 0, 0], sizes = [1, 16, 128], strides = [1, 1, 1]} : vector<4x16x128xf32> to vector<1x16x128xf32>
    %85 = vector.shape_cast %84 : vector<1x16x128xf32> to vector<16x128xf32>
    %86 = arith.addf %83, %85 : vector<16x128xf32>
    %87 = vector.extract_strided_slice %81 {offsets = [2, 0, 0], sizes = [1, 16, 128], strides = [1, 1, 1]} : vector<4x16x128xf32> to vector<1x16x128xf32>
    %88 = vector.shape_cast %87 : vector<1x16x128xf32> to vector<16x128xf32>
    %89 = arith.addf %86, %88 : vector<16x128xf32>
    %90 = vector.extract_strided_slice %81 {offsets = [3, 0, 0], sizes = [1, 16, 128], strides = [1, 1, 1]} : vector<4x16x128xf32> to vector<1x16x128xf32>
    %91 = vector.shape_cast %90 : vector<1x16x128xf32> to vector<16x128xf32>
    %92 = arith.addf %89, %91 : vector<16x128xf32>
    %93 = arith.subf %23, %92 : vector<16x128xf32>
    %94 = vector.shape_cast %93 : vector<16x128xf32> to vector<1x16x128xf32>
    %95 = vector.broadcast %94 : vector<1x16x128xf32> to vector<4x16x128xf32>
    %96 = arith.mulf %11, %95 : vector<4x16x128xf32>
    %97 = arith.addf %80, %96 : vector<4x16x128xf32>
    %98 = arith.addf %97, %78 : vector<4x16x128xf32>
    %c3_i32 = arith.constant 3 : i32
    %cst_17 = arith.constant -0.00999999977 : f32
    %cst_18 = arith.constant 0.00999999977 : f32
    %99 = vector.broadcast %cst_17 : f32 to vector<4x16x128xf32>
    %100 = arith.maximumf %99, %98 : vector<4x16x128xf32>
    %101 = vector.broadcast %cst_18 : f32 to vector<4x16x128xf32>
    %102 = arith.minimumf %101, %100 : vector<4x16x128xf32>
    %103 = arith.addf %102, %102 : vector<4x16x128xf32>
    %104 = arith.subf %98, %103 : vector<4x16x128xf32>
    %105 = arith.mulf %3, %104 : vector<4x16x128xf32>
    %106 = vector.extract_strided_slice %105 {offsets = [0, 0, 0], sizes = [1, 16, 128], strides = [1, 1, 1]} : vector<4x16x128xf32> to vector<1x16x128xf32>
    %107 = vector.shape_cast %106 : vector<1x16x128xf32> to vector<16x128xf32>
    %108 = vector.extract_strided_slice %105 {offsets = [1, 0, 0], sizes = [1, 16, 128], strides = [1, 1, 1]} : vector<4x16x128xf32> to vector<1x16x128xf32>
    %109 = vector.shape_cast %108 : vector<1x16x128xf32> to vector<16x128xf32>
    %110 = arith.addf %107, %109 : vector<16x128xf32>
    %111 = vector.extract_strided_slice %105 {offsets = [2, 0, 0], sizes = [1, 16, 128], strides = [1, 1, 1]} : vector<4x16x128xf32> to vector<1x16x128xf32>
    %112 = vector.shape_cast %111 : vector<1x16x128xf32> to vector<16x128xf32>
    %113 = arith.addf %110, %112 : vector<16x128xf32>
    %114 = vector.extract_strided_slice %105 {offsets = [3, 0, 0], sizes = [1, 16, 128], strides = [1, 1, 1]} : vector<4x16x128xf32> to vector<1x16x128xf32>
    %115 = vector.shape_cast %114 : vector<1x16x128xf32> to vector<16x128xf32>
    %116 = arith.addf %113, %115 : vector<16x128xf32>
    %117 = arith.subf %23, %116 : vector<16x128xf32>
    %118 = vector.shape_cast %117 : vector<16x128xf32> to vector<1x16x128xf32>
    %119 = vector.broadcast %118 : vector<1x16x128xf32> to vector<4x16x128xf32>
    %120 = arith.mulf %11, %119 : vector<4x16x128xf32>
    %121 = arith.addf %104, %120 : vector<4x16x128xf32>
    %122 = arith.addf %121, %102 : vector<4x16x128xf32>
    %c4_i32 = arith.constant 4 : i32
    %cst_19 = arith.constant -0.00999999977 : f32
    %cst_20 = arith.constant 0.00999999977 : f32
    %123 = vector.broadcast %cst_19 : f32 to vector<4x16x128xf32>
    %124 = arith.maximumf %123, %122 : vector<4x16x128xf32>
    %125 = vector.broadcast %cst_20 : f32 to vector<4x16x128xf32>
    %126 = arith.minimumf %125, %124 : vector<4x16x128xf32>
    %127 = arith.addf %126, %126 : vector<4x16x128xf32>
    %128 = arith.subf %122, %127 : vector<4x16x128xf32>
    %129 = arith.mulf %3, %128 : vector<4x16x128xf32>
    %130 = vector.extract_strided_slice %129 {offsets = [0, 0, 0], sizes = [1, 16, 128], strides = [1, 1, 1]} : vector<4x16x128xf32> to vector<1x16x128xf32>
    %131 = vector.shape_cast %130 : vector<1x16x128xf32> to vector<16x128xf32>
    %132 = vector.extract_strided_slice %129 {offsets = [1, 0, 0], sizes = [1, 16, 128], strides = [1, 1, 1]} : vector<4x16x128xf32> to vector<1x16x128xf32>
    %133 = vector.shape_cast %132 : vector<1x16x128xf32> to vector<16x128xf32>
    %134 = arith.addf %131, %133 : vector<16x128xf32>
    %135 = vector.extract_strided_slice %129 {offsets = [2, 0, 0], sizes = [1, 16, 128], strides = [1, 1, 1]} : vector<4x16x128xf32> to vector<1x16x128xf32>
    %136 = vector.shape_cast %135 : vector<1x16x128xf32> to vector<16x128xf32>
    %137 = arith.addf %134, %136 : vector<16x128xf32>
    %138 = vector.extract_strided_slice %129 {offsets = [3, 0, 0], sizes = [1, 16, 128], strides = [1, 1, 1]} : vector<4x16x128xf32> to vector<1x16x128xf32>
    %139 = vector.shape_cast %138 : vector<1x16x128xf32> to vector<16x128xf32>
    %140 = arith.addf %137, %139 : vector<16x128xf32>
    %141 = arith.subf %23, %140 : vector<16x128xf32>
    %142 = vector.shape_cast %141 : vector<16x128xf32> to vector<1x16x128xf32>
    %143 = vector.broadcast %142 : vector<1x16x128xf32> to vector<4x16x128xf32>
    %144 = arith.mulf %11, %143 : vector<4x16x128xf32>
    %145 = arith.addf %128, %144 : vector<4x16x128xf32>
    %146 = arith.addf %145, %126 : vector<4x16x128xf32>
    %c5_i32 = arith.constant 5 : i32
    %cst_21 = arith.constant -0.00999999977 : f32
    %cst_22 = arith.constant 0.00999999977 : f32
    %147 = vector.broadcast %cst_21 : f32 to vector<4x16x128xf32>
    %148 = arith.maximumf %147, %146 : vector<4x16x128xf32>
    %149 = vector.broadcast %cst_22 : f32 to vector<4x16x128xf32>
    %150 = arith.minimumf %149, %148 : vector<4x16x128xf32>
    %151 = arith.addf %150, %150 : vector<4x16x128xf32>
    %152 = arith.subf %146, %151 : vector<4x16x128xf32>
    %153 = arith.mulf %3, %152 : vector<4x16x128xf32>
    %154 = vector.extract_strided_slice %153 {offsets = [0, 0, 0], sizes = [1, 16, 128], strides = [1, 1, 1]} : vector<4x16x128xf32> to vector<1x16x128xf32>
    %155 = vector.shape_cast %154 : vector<1x16x128xf32> to vector<16x128xf32>
    %156 = vector.extract_strided_slice %153 {offsets = [1, 0, 0], sizes = [1, 16, 128], strides = [1, 1, 1]} : vector<4x16x128xf32> to vector<1x16x128xf32>
    %157 = vector.shape_cast %156 : vector<1x16x128xf32> to vector<16x128xf32>
    %158 = arith.addf %155, %157 : vector<16x128xf32>
    %159 = vector.extract_strided_slice %153 {offsets = [2, 0, 0], sizes = [1, 16, 128], strides = [1, 1, 1]} : vector<4x16x128xf32> to vector<1x16x128xf32>
    %160 = vector.shape_cast %159 : vector<1x16x128xf32> to vector<16x128xf32>
    %161 = arith.addf %158, %160 : vector<16x128xf32>
    %162 = vector.extract_strided_slice %153 {offsets = [3, 0, 0], sizes = [1, 16, 128], strides = [1, 1, 1]} : vector<4x16x128xf32> to vector<1x16x128xf32>
    %163 = vector.shape_cast %162 : vector<1x16x128xf32> to vector<16x128xf32>
    %164 = arith.addf %161, %163 : vector<16x128xf32>
    %165 = arith.subf %23, %164 : vector<16x128xf32>
    %166 = vector.shape_cast %165 : vector<16x128xf32> to vector<1x16x128xf32>
    %167 = vector.broadcast %166 : vector<1x16x128xf32> to vector<4x16x128xf32>
    %168 = arith.mulf %11, %167 : vector<4x16x128xf32>
    %169 = arith.addf %152, %168 : vector<4x16x128xf32>
    %170 = arith.addf %169, %150 : vector<4x16x128xf32>
    %c6_i32 = arith.constant 6 : i32
    %cst_23 = arith.constant -0.00999999977 : f32
    %cst_24 = arith.constant 0.00999999977 : f32
    %171 = vector.broadcast %cst_23 : f32 to vector<4x16x128xf32>
    %172 = arith.maximumf %171, %170 : vector<4x16x128xf32>
    %173 = vector.broadcast %cst_24 : f32 to vector<4x16x128xf32>
    %174 = arith.minimumf %173, %172 : vector<4x16x128xf32>
    %175 = arith.addf %174, %174 : vector<4x16x128xf32>
    %176 = arith.subf %170, %175 : vector<4x16x128xf32>
    %177 = arith.mulf %3, %176 : vector<4x16x128xf32>
    %178 = vector.extract_strided_slice %177 {offsets = [0, 0, 0], sizes = [1, 16, 128], strides = [1, 1, 1]} : vector<4x16x128xf32> to vector<1x16x128xf32>
    %179 = vector.shape_cast %178 : vector<1x16x128xf32> to vector<16x128xf32>
    %180 = vector.extract_strided_slice %177 {offsets = [1, 0, 0], sizes = [1, 16, 128], strides = [1, 1, 1]} : vector<4x16x128xf32> to vector<1x16x128xf32>
    %181 = vector.shape_cast %180 : vector<1x16x128xf32> to vector<16x128xf32>
    %182 = arith.addf %179, %181 : vector<16x128xf32>
    %183 = vector.extract_strided_slice %177 {offsets = [2, 0, 0], sizes = [1, 16, 128], strides = [1, 1, 1]} : vector<4x16x128xf32> to vector<1x16x128xf32>
    %184 = vector.shape_cast %183 : vector<1x16x128xf32> to vector<16x128xf32>
    %185 = arith.addf %182, %184 : vector<16x128xf32>
    %186 = vector.extract_strided_slice %177 {offsets = [3, 0, 0], sizes = [1, 16, 128], strides = [1, 1, 1]} : vector<4x16x128xf32> to vector<1x16x128xf32>
    %187 = vector.shape_cast %186 : vector<1x16x128xf32> to vector<16x128xf32>
    %188 = arith.addf %185, %187 : vector<16x128xf32>
    %189 = arith.subf %23, %188 : vector<16x128xf32>
    %190 = vector.shape_cast %189 : vector<16x128xf32> to vector<1x16x128xf32>
    %191 = vector.broadcast %190 : vector<1x16x128xf32> to vector<4x16x128xf32>
    %192 = arith.mulf %11, %191 : vector<4x16x128xf32>
    %193 = arith.addf %176, %192 : vector<4x16x128xf32>
    %194 = arith.addf %193, %174 : vector<4x16x128xf32>
    %cst_25 = arith.constant -0.00999999977 : f32
    %cst_26 = arith.constant 0.00999999977 : f32
    %195 = vector.broadcast %cst_25 : f32 to vector<4x16x128xf32>
    %196 = arith.maximumf %195, %194 : vector<4x16x128xf32>
    %197 = vector.broadcast %cst_26 : f32 to vector<4x16x128xf32>
    %198 = arith.minimumf %197, %196 : vector<4x16x128xf32>
    %199 = arith.subf %194, %198 : vector<4x16x128xf32>
    %c0_27 = arith.constant 0 : index
    %c0_28 = arith.constant 0 : index
    %c0_29 = arith.constant 0 : index
    %c0_30 = arith.constant 0 : index
    %200 = vector.load %arg5[%c0_27, %c0_28, %c0_29, %c0_30] : memref<1x4x16x128xf32, #tpu.memory_space<vmem>>, vector<1x4x16x128xf32>
    %201 = vector.shape_cast %200 : vector<1x4x16x128xf32> to vector<4x16x128xf32>
    %202 = vector.shape_cast %199 : vector<4x16x128xf32> to vector<1x4x16x128xf32>
    tpu.vector_store %arg5[%c0_27, %c0_28, %c0_29, %c0_30], %202 {strides = array<i32>} : memref<1x4x16x128xf32, #tpu.memory_space<vmem>>, vector<1x4x16x128xf32>,
    return
  }
  func.func @transform_0(%arg0: i32, %arg1: i32) -> (i32, i32, i32, i32) {
    %c0_i32 = arith.constant 0 : i32
    %c0_i32_0 = arith.constant 0 : i32
    %c0_i32_1 = arith.constant 0 : i32
    return %arg0, %c0_i32, %arg1, %c0_i32_0 : i32, i32, i32, i32
  }
  func.func @transform_1(%arg0: i32, %arg1: i32) -> (i32, i32, i32, i32) {
    %c0_i32 = arith.constant 0 : i32
    %c0_i32_0 = arith.constant 0 : i32
    %c0_i32_1 = arith.constant 0 : i32
    return %arg0, %c0_i32, %arg1, %c0_i32_0 : i32, i32, i32, i32
  }
  func.func @transform_2(%arg0: i32, %arg1: i32) -> (i32, i32, i32, i32) {
    %c0_i32 = arith.constant 0 : i32
    %c0_i32_0 = arith.constant 0 : i32
    %c0_i32_1 = arith.constant 0 : i32
    return %arg0, %c0_i32, %arg1, %c0_i32_0 : i32, i32, i32, i32
  }
  func.func @transform_3(%arg0: i32, %arg1: i32) -> (i32, i32, i32, i32) {
    %c0_i32 = arith.constant 0 : i32
    %c0_i32_0 = arith.constant 0 : i32
    %c0_i32_1 = arith.constant 0 : i32
    return %arg0, %c0_i32, %arg1, %c0_i32_0 : i32, i32, i32, i32
  }
}

</mosaic_0001>

<llo_original>
// kernel: tpu_custom_call.1
$region0: #{tpu_custom_call.1}
  #allocation0 [shape = 'u32[]', space=smem, size = 0x4, offset = 0x4, fixed_abs, tag = 'smem constant byte address 0x4 - core index']
  #allocation1 [shape = 'u32[144,128]{1,0:T(1,128)}', space=vmem, size = 0x12000, scoped, tag = 'internal scratch']
  %s0 = inlined_call_operand.hbm [shape: f32[2,4,16,128], index: 0, kind: input, shape index: {}]
  %s1 = inlined_call_operand.hbm [shape: f32[2,4,16,128], index: 1, kind: input, shape index: {}]
  %s2 = inlined_call_operand.hbm [shape: f32[2,1,16,128], index: 2, kind: input, shape index: {}]
  %s3 = inlined_call_operand.hbm [shape: f32[2,4,16,128], index: 3, kind: output, shape index: {}]
  %s4 = sld [smem:[#allocation0]]
  $region57: #{tpu_custom_call.1} parent=0
    _
  %s6 = ssub.s32 1, %s4
  %s7 = scalar_select 0, %s6, %s4
  $region1: #{tpu_custom_call.1} parent=0
    #allocation2 [shape = 'u8[65536]{0}', space=vmem, size = 0x10000, scoped, tag = 'input window, operand 0']
    #allocation3 [shape = 's32[2]{0}', space=sflag, size = 0x8, scoped, tag = 'scoped memory for tpu_custom_call.1']
    #allocation4 [shape = 's32[2]{0}', space=sflag, size = 0x8, scoped, tag = 'scoped memory for tpu_custom_call.1']
    #allocation5 [shape = 'u8[65536]{0}', space=vmem, size = 0x10000, scoped, tag = 'input window, operand 1']
    #allocation6 [shape = 's32[2]{0}', space=sflag, size = 0x8, scoped, tag = 'scoped memory for tpu_custom_call.1']
    #allocation7 [shape = 'u8[16384]{0}', space=vmem, size = 0x4000, scoped, tag = 'input window, operand 2']
    #allocation8 [shape = 'u8[65536]{0}', space=vmem, size = 0x10000, scoped, tag = 'output window, operand 0']
    %8 = vsyncpa [#allocation3], 0
    %s9 = scalar_lea.sflag [#allocation3], 1
    %10 = vsyncpa %s9, 0
    %11 = vsyncpa [#allocation6], 0
    %s12 = scalar_lea.sflag [#allocation6], 1
    %13 = vsyncpa %s12, 0
    %14 = vsyncpa [#allocation4], 0
    %s15 = scalar_lea.sflag [#allocation4], 1
    %16 = vsyncpa %s15, 0
    loop: start=0, step=1, limit=4
    $region2: #{tpu_custom_call.1} parent=1 // loop_pre_header
      _
    $region3: #{tpu_custom_call.1} parent=1 // loop_header
      %s18 = sphi 0, %s22
      %p19 = scmp.ge.s32.totalorder %s18, 4
      %s25 = sphi 0, %s37
      %s26 = sphi 0, %s33
      %s27 = sphi 0, %s25
      %s28 = sphi 0, %s26
      %s29 = sphi 0, %s27
      %s30 = sphi 0, %s28
      %s42 = sphi 0, %s44
      %s45 = sphi 0, %s42
      %s46 = sphi 0, %s45
      %s62 = sphi 0, %s46
      %s70 = sphi 0, %s72
      %s73 = sphi 0, %s70
      %s74 = sphi 0, %s73
      %s90 = sphi 0, %s74
      %s98 = sphi 0, %s100
      %s101 = sphi 0, %s98
      %s102 = sphi 0, %s101
      %s118 = sphi 0, %s102
      %s126 = sphi 0, %s128
      %s129 = sphi 0, %s126
      %s130 = sphi 0, %s129
      %s146 = sphi 0, %s130
    $region4: #{tpu_custom_call.1} parent=1 // loop_header_branch
      %21 = sbr.rel (%p19) target = $region8
    $region5: #{tpu_custom_call.1} parent=1 // loop_body
      %s23 = ssub.s32 %s18, 1
      %s24 = ssub.s32 %s18, 2
      %s31 = sadd.s32 1, %s26
      %p32 = scmp.ge.s32.totalorder %s31, 1
      %s33 = scalar_select %p32, 0, %s31
      %s34 = sadd.s32 1, %s25
      %s35 = scalar_select %p32, %s34, %s25
      %p36 = scmp.ge.s32.totalorder %s35, 2
      %s37 = scalar_select %p36, 0, %s35
      %s38 = ssub.s32 %s25, %s37
      %s39 = ssub.s32 %s26, %s33
      %s40 = sor.u32 %s38, %s39
      %p41 = scmp.eq.s32.totalorder %s40, 0
      %s43 = sadd.s32 %s42, 1
      %s44 = scalar_select %p41, %s42, %s43
      %p47 = pneg %p41
      %p48 = scmp.eq.s32.totalorder %s18, 1
      %p49 = por %p47, %p48
      %p50 = scmp.ne.s32.totalorder %s42, %s45
      %p51 = scmp.eq.s32.totalorder %s18, 0
      %p52 = por %p50, %p51
      %p53 = scmp.ne.s32.totalorder %s42, %s45
      %p54 = scmp.eq.s32.totalorder %s23, 1
      %p55 = por %p53, %p54
      %p56 = scmp.ne.s32.totalorder %s45, %s46
      %p57 = scmp.eq.s32.totalorder %s23, 0
      %p58 = por %p56, %p57
      %p59 = scmp.ne.s32.totalorder %s45, %s46
      %p60 = scmp.eq.s32.totalorder %s24, 1
      %p61 = por %p59, %p60
      %p63 = scmp.ne.s32.totalorder %s46, %s62
      %p64 = scmp.eq.s32.totalorder %s24, 0
      %p65 = por %p63, %p64
      %s66 = ssub.s32 %s25, %s37
      %s67 = ssub.s32 %s26, %s33
      %s68 = sor.u32 %s66, %s67
      %p69 = scmp.eq.s32.totalorder %s68, 0
      %s71 = sadd.s32 %s70, 1
      %s72 = scalar_select %p69, %s70, %s71
      %p75 = pneg %p69
      %p76 = scmp.eq.s32.totalorder %s18, 1
      %p77 = por %p75, %p76
      %p78 = scmp.ne.s32.totalorder %s70, %s73
      %p79 = scmp.eq.s32.totalorder %s18, 0
      %p80 = por %p78, %p79
      %p81 = scmp.ne.s32.totalorder %s70, %s73
      %p82 = scmp.eq.s32.totalorder %s23, 1
      %p83 = por %p81, %p82
      %p84 = scmp.ne.s32.totalorder %s73, %s74
      %p85 = scmp.eq.s32.totalorder %s23, 0
      %p86 = por %p84, %p85
      %p87 = scmp.ne.s32.totalorder %s73, %s74
      %p88 = scmp.eq.s32.totalorder %s24, 1
      %p89 = por %p87, %p88
      %p91 = scmp.ne.s32.totalorder %s74, %s90
      %p92 = scmp.eq.s32.totalorder %s24, 0
      %p93 = por %p91, %p92
      %s94 = ssub.s32 %s25, %s37
      %s95 = ssub.s32 %s26, %s33
      %s96 = sor.u32 %s94, %s95
      %p97 = scmp.eq.s32.totalorder %s96, 0
      %s99 = sadd.s32 %s98, 1
      %s100 = scalar_select %p97, %s98, %s99
      %p103 = pneg %p97
      %p104 = scmp.eq.s32.totalorder %s18, 1
      %p105 = por %p103, %p104
      %p106 = scmp.ne.s32.totalorder %s98, %s101
      %p107 = scmp.eq.s32.totalorder %s18, 0
      %p108 = por %p106, %p107
      %p109 = scmp.ne.s32.totalorder %s98, %s101
      %p110 = scmp.eq.s32.totalorder %s23, 1
      %p111 = por %p109, %p110
      %p112 = scmp.ne.s32.totalorder %s101, %s102
      %p113 = scmp.eq.s32.totalorder %s23, 0
      %p114 = por %p112, %p113
      %p115 = scmp.ne.s32.totalorder %s101, %s102
      %p116 = scmp.eq.s32.totalorder %s24, 1
      %p117 = por %p115, %p116
      %p119 = scmp.ne.s32.totalorder %s102, %s118
      %p120 = scmp.eq.s32.totalorder %s24, 0
      %p121 = por %p119, %p120
      %s122 = ssub.s32 %s25, %s37
      %s123 = ssub.s32 %s26, %s33
      %s124 = sor.u32 %s122, %s123
      %p125 = scmp.eq.s32.totalorder %s124, 0
      %s127 = sadd.s32 %s126, 1
      %s128 = scalar_select %p125, %s126, %s127
      %p131 = pneg %p125
      %p132 = scmp.eq.s32.totalorder %s18, 1
      %p133 = por %p131, %p132
      %p134 = scmp.ne.s32.totalorder %s126, %s129
      %p135 = scmp.eq.s32.totalorder %s18, 0
      %p136 = por %p134, %p135
      %p137 = scmp.ne.s32.totalorder %s126, %s129
      %p138 = scmp.eq.s32.totalorder %s23, 1
      %p139 = por %p137, %p138
      %p140 = scmp.ne.s32.totalorder %s129, %s130
      %p141 = scmp.eq.s32.totalorder %s23, 0
      %p142 = por %p140, %p141
      %p143 = scmp.ne.s32.totalorder %s129, %s130
      %p144 = scmp.eq.s32.totalorder %s24, 1
      %p145 = por %p143, %p144
      %p147 = scmp.ne.s32.totalorder %s130, %s146
      %p148 = scmp.eq.s32.totalorder %s24, 0
      %p149 = por %p147, %p148
      %p150 = scmp.le.s32.totalorder 1, %s18
      %p151 = scmp.lt.s32.totalorder %s18, 3
      %p152 = pnand %p150, %p151
      %p153 = pneg %p152
      // Predicated region
      $region9: #{tpu_custom_call.1} parent=5 // pred_check
        _
      $region10: #{tpu_custom_call.1} parent=5 // pred_check_branch
        %155 = sbr.rel (%p152) target = $region12
      $region11: #{tpu_custom_call.1} parent=5 // pred_region
        %s156 = ssub.s32 %s18, 1
      $region12: #{tpu_custom_call.1} parent=5 // pred_fallthru
        _
      %p157 = scmp.lt.s32.totalorder %s18, 2
      // Predicated region
      $region13: #{tpu_custom_call.1} parent=5 // pred_check
        %p158 = pneg %p157
      $region14: #{tpu_custom_call.1} parent=5 // pred_check_branch
        %160 = sbr.rel (%p158) target = $region16
      $region15: #{tpu_custom_call.1} parent=5 // pred_region
        // Predicated region
        $region17: #{tpu_custom_call.1} parent=15 // pred_check
          %p161 = pneg %p52
        $region18: #{tpu_custom_call.1} parent=15 // pred_check_branch
          %163 = sbr.rel (%p161) target = $region20
        $region19: #{tpu_custom_call.1} parent=15 // pred_region
          %s164 = sand.u32 %s42, 1
          %s165 = scalar_lea.sflag [#allocation3], %s164
          %s166 = sand.u32 %s42, 1
          %s167 = smul.addr %s166, 64
          %s168 = scalar_lea.vmem [#allocation2], %s167
          %s169 = smul.u32 2, %s26
          %s171 = ssub.s32 1024, 1024
          %172 = vsyncadd %s165, %s171
          %s173 = smul.addr %s25, 8
          %s174 = sadd.s32 %s169, %s173
          %s175 = smul.addr %s174, 128
          %s176 = scalar_lea.hbm %s0, %s175
          %s177 = sshll.u32 %s168, 4
          %s178 = int_to_ptr.vmem [resolvable:$true] %s177
          %183 = dma.hbm_to_vmem [thread:$0]  %s176, 1024, %s178, %s165, 128, 128, 8
        $region20: #{tpu_custom_call.1} parent=15 // pred_fallthru
          _
        // Predicated region
        $region21: #{tpu_custom_call.1} parent=15 // pred_check
          %p184 = pneg %p80
        $region22: #{tpu_custom_call.1} parent=15 // pred_check_branch
          %186 = sbr.rel (%p184) target = $region24
        $region23: #{tpu_custom_call.1} parent=15 // pred_region
          %s187 = sand.u32 %s18, 1
          %s188 = scalar_lea.sflag [#allocation6], %s187
          %s189 = sand.u32 %s70, 1
          %s190 = smul.addr %s189, 64
          %s191 = scalar_lea.vmem [#allocation5], %s190
          %s192 = smul.u32 2, %s26
          %s194 = ssub.s32 1024, 1024
          %195 = vsyncadd %s188, %s194
          %s196 = smul.addr %s25, 8
          %s197 = sadd.s32 %s192, %s196
          %s198 = smul.addr %s197, 128
          %s199 = scalar_lea.hbm %s1, %s198
          %s200 = sshll.u32 %s191, 4
          %s201 = int_to_ptr.vmem [resolvable:$true] %s200
          %206 = dma.hbm_to_vmem [thread:$0]  %s199, 1024, %s201, %s188, 128, 128, 8
        $region24: #{tpu_custom_call.1} parent=15 // pred_fallthru
          _
        // Predicated region
        $region25: #{tpu_custom_call.1} parent=15 // pred_check
          %p207 = pneg %p108
        $region26: #{tpu_custom_call.1} parent=15 // pred_check_branch
          %209 = sbr.rel (%p207) target = $region28
        $region27: #{tpu_custom_call.1} parent=15 // pred_region
          %s210 = sand.u32 %s18, 1
          %s211 = scalar_lea.sflag [#allocation6], %s210
          %s212 = sand.u32 %s98, 1
          %s213 = smul.addr %s212, 16
          %s214 = scalar_lea.vmem [#allocation7], %s213
          %s215 = smul.u32 2, %s26
          %s217 = ssub.s32 256, 256
          %218 = vsyncadd %s211, %s217
          %s219 = smul.addr %s25, 2
          %s220 = sadd.s32 %s215, %s219
          %s221 = smul.addr %s220, 128
          %s222 = scalar_lea.hbm %s2, %s221
          %s223 = sshll.u32 %s214, 4
          %s224 = int_to_ptr.vmem [resolvable:$true] %s223
          %229 = dma.hbm_to_vmem [thread:$0]  %s222, 256, %s224, %s211, 128, 128, 8
        $region28: #{tpu_custom_call.1} parent=15 // pred_fallthru
          _
      $region16: #{tpu_custom_call.1} parent=5 // pred_fallthru
        _
      %p230 = scmp.le.s32.totalorder 1, %s18
      %p231 = scmp.lt.s32.totalorder %s18, 3
      %p232 = pnand %p230, %p231
      %p233 = pneg %p232
      // Predicated region
      $region29: #{tpu_custom_call.1} parent=5 // pred_check
        _
      $region30: #{tpu_custom_call.1} parent=5 // pred_check_branch
        %235 = sbr.rel (%p232) target = $region32
      $region31: #{tpu_custom_call.1} parent=5 // pred_region
        %s236 = ssub.s32 %s18, 1
        %s237 = sand.u32 %s45, 1
        %s238 = scalar_lea.sflag [#allocation3], %s237
        %s239 = sand.u32 %s45, 1
        %s240 = smul.addr %s239, 64
        %s241 = scalar_lea.vmem [#allocation2], %s240
        // Predicated region
        $region33: #{tpu_custom_call.1} parent=31 // pred_check
          %p242 = pneg %p58
        $region34: #{tpu_custom_call.1} parent=31 // pred_check_branch
          %244 = sbr.rel (%p242) target = $region36
        $region35: #{tpu_custom_call.1} parent=31 // pred_region
          %245 = dma.done %s238, 1024
        $region36: #{tpu_custom_call.1} parent=31 // pred_fallthru
          _
        %s246 = sand.u32 %s23, 1
        %s247 = scalar_lea.sflag [#allocation6], %s246
        %s248 = sand.u32 %s73, 1
        %s249 = smul.addr %s248, 64
        %s250 = scalar_lea.vmem [#allocation5], %s249
        // Predicated region
        $region37: #{tpu_custom_call.1} parent=31 // pred_check
          %p251 = pneg %p86
        $region38: #{tpu_custom_call.1} parent=31 // pred_check_branch
          %253 = sbr.rel (%p251) target = $region40
        $region39: #{tpu_custom_call.1} parent=31 // pred_region
          %254 = dma.done %s247, 1024
        $region40: #{tpu_custom_call.1} parent=31 // pred_fallthru
          _
        %s255 = sand.u32 %s23, 1
        %s256 = scalar_lea.sflag [#allocation6], %s255
        %s257 = sand.u32 %s101, 1
        %s258 = smul.addr %s257, 16
        %s259 = scalar_lea.vmem [#allocation7], %s258
        // Predicated region
        $region41: #{tpu_custom_call.1} parent=31 // pred_check
          %p260 = pneg %p114
        $region42: #{tpu_custom_call.1} parent=31 // pred_check_branch
          %262 = sbr.rel (%p260) target = $region44
        $region43: #{tpu_custom_call.1} parent=31 // pred_region
          %263 = dma.done %s256, 256
        $region44: #{tpu_custom_call.1} parent=31 // pred_fallthru
          _
        %s264 = sand.u32 %s45, 1
        %s265 = scalar_lea.sflag [#allocation3], %s264
        %s266 = sand.u32 %s45, 1
        %s267 = smul.addr %s266, 64
        %s268 = scalar_lea.vmem [#allocation2], %s267
        %p269 = pneg %p58
        %p270 = pneg %p55
        %s271 = sand.u32 %s23, 1
        %s272 = scalar_lea.sflag [#allocation6], %s271
        %s273 = sand.u32 %s73, 1
        %s274 = smul.addr %s273, 64
        %s275 = scalar_lea.vmem [#allocation5], %s274
        %p276 = pneg %p86
        %p277 = pneg %p83
        %s278 = sand.u32 %s23, 1
        %s279 = scalar_lea.sflag [#allocation6], %s278
        %s280 = sand.u32 %s101, 1
        %s281 = smul.addr %s280, 16
        %s282 = scalar_lea.vmem [#allocation7], %s281
        %p283 = pneg %p114
        %p284 = pneg %p111
        %p285 = pneg %p142
        %p286 = pneg %p139
        %s287 = sand.u32 %s129, 1
        %s288 = scalar_lea.sflag [#allocation4], %s287
        %s289 = sand.u32 %s129, 1
        %s290 = smul.addr %s289, 64
        %s291 = scalar_lea.vmem [#allocation8], %s290
        %s292 = smul.u32 2, %s28
        %s293 = smul.u32 2, %s28
        %s294 = smul.u32 2, %s28
        %s295 = smul.u32 2, %s28
        %v296 = vld [vmem:[%s241] sm:$0xff]
        %v297 = vld [vmem:[%s241 + $0x8] sm:$0xff]
        %v298 = vld [vmem:[%s241 + $0x10] sm:$0xff]
        %v299 = vld [vmem:[%s241 + $0x18] sm:$0xff]
        %v300 = vld [vmem:[%s241 + $0x20] sm:$0xff]
        %v301 = vld [vmem:[%s241 + $0x28] sm:$0xff]
        %v302 = vld [vmem:[%s241 + $0x30] sm:$0xff]
        %v303 = vld [vmem:[%s241 + $0x38] sm:$0xff]
        %v304 = vld [vmem:[%s250] sm:$0xff]
        %v305 = vld [vmem:[%s250 + $0x8] sm:$0xff]
        %v306 = vld [vmem:[%s250 + $0x10] sm:$0xff]
        %v307 = vld [vmem:[%s250 + $0x18] sm:$0xff]
        %v308 = vld [vmem:[%s250 + $0x20] sm:$0xff]
        %v309 = vld [vmem:[%s250 + $0x28] sm:$0xff]
        %v310 = vld [vmem:[%s250 + $0x30] sm:$0xff]
        %v311 = vld [vmem:[%s250 + $0x38] sm:$0xff]
        %v312 = vld [vmem:[%s259] sm:$0xff]
        %v313 = vld [vmem:[%s259 + $0x8] sm:$0xff]
        %v314 = vadd.f32 %v312, 0.01
        %v315 = vadd.f32 %v313, 0.01
        %v316 = vrcp.pop %v314
        %v317 = vrcp.pop %v315
        %v318 = vmul.f32 %v304, %v316
        %v319 = vmul.f32 %v305, %v317
        %v320 = vmul.f32 %v306, %v316
        %v321 = vmul.f32 %v307, %v317
        %v322 = vmul.f32 %v308, %v316
        %v323 = vmul.f32 %v309, %v317
        %v324 = vmul.f32 %v310, %v316
        %v325 = vmul.f32 %v311, %v317
        %v326 = vmul.f32 %v304, %v296
        %v327 = vmul.f32 %v305, %v297
        %v328 = vmul.f32 %v306, %v298
        %v329 = vmul.f32 %v307, %v299
        %v330 = vmul.f32 %v308, %v300
        %v331 = vmul.f32 %v309, %v301
        %v332 = vmul.f32 %v310, %v302
        %v333 = vmul.f32 %v311, %v303
        %v334 = vadd.f32 %v326, %v328
        %v335 = vadd.f32 %v327, %v329
        %v336 = vadd.f32 %v334, %v330
        %v337 = vadd.f32 %v335, %v331
        %v338 = vadd.f32 %v336, %v332
        %v339 = vadd.f32 %v337, %v333
        %v340 = vmul.f32 %v318, %v338
        %v341 = vmul.f32 %v319, %v339
        %v342 = vmul.f32 %v320, %v338
        %v343 = vmul.f32 %v321, %v339
        %v344 = vmul.f32 %v322, %v338
        %v345 = vmul.f32 %v323, %v339
        %v346 = vmul.f32 %v324, %v338
        %v347 = vmul.f32 %v325, %v339
        %v348 = vmax.f32 %v340, -0.01
        %v349 = vmax.f32 %v341, -0.01
        %v350 = vmax.f32 %v342, -0.01
        %v351 = vmax.f32 %v343, -0.01
        %v352 = vmax.f32 %v344, -0.01
        %v353 = vmax.f32 %v345, -0.01
        %v354 = vmax.f32 %v346, -0.01
        %v355 = vmax.f32 %v347, -0.01
        %v356 = vmin.f32 %v348, 0.01
        %v357 = vmin.f32 %v349, 0.01
        %v358 = vmin.f32 %v350, 0.01
        %v359 = vmin.f32 %v351, 0.01
        %v360 = vmin.f32 %v352, 0.01
        %v361 = vmin.f32 %v353, 0.01
        %v362 = vmin.f32 %v354, 0.01
        %v363 = vmin.f32 %v355, 0.01
        %v364 = vadd.f32 %v356, %v356
        %v365 = vadd.f32 %v357, %v357
        %v366 = vadd.f32 %v358, %v358
        %v367 = vadd.f32 %v359, %v359
        %v368 = vadd.f32 %v360, %v360
        %v369 = vadd.f32 %v361, %v361
        %v370 = vadd.f32 %v362, %v362
        %v371 = vadd.f32 %v363, %v363
        %v372 = vsub.f32 %v340, %v364
        %v373 = vsub.f32 %v341, %v365
        %v374 = vsub.f32 %v342, %v366
        %v375 = vsub.f32 %v343, %v367
        %v376 = vsub.f32 %v344, %v368
        %v377 = vsub.f32 %v345, %v369
        %v378 = vsub.f32 %v346, %v370
        %v379 = vsub.f32 %v347, %v371
        %v380 = vmul.f32 %v304, %v372
        %v381 = vmul.f32 %v305, %v373
        %v382 = vmul.f32 %v306, %v374
        %v383 = vmul.f32 %v307, %v375
        %v384 = vmul.f32 %v308, %v376
        %v385 = vmul.f32 %v309, %v377
        %v386 = vmul.f32 %v310, %v378
        %v387 = vmul.f32 %v311, %v379
        %v388 = vadd.f32 %v380, %v382
        %v389 = vadd.f32 %v381, %v383
        %v390 = vadd.f32 %v388, %v384
        %v391 = vadd.f32 %v389, %v385
        %v392 = vadd.f32 %v390, %v386
        %v393 = vadd.f32 %v391, %v387
        %v394 = vsub.f32 %v338, %v392
        %v395 = vsub.f32 %v339, %v393
        %v396 = vmul.f32 %v318, %v394
        %v397 = vmul.f32 %v319, %v395
        %v398 = vmul.f32 %v320, %v394
        %v399 = vmul.f32 %v321, %v395
        %v400 = vmul.f32 %v322, %v394
        %v401 = vmul.f32 %v323, %v395
        %v402 = vmul.f32 %v324, %v394
        %v403 = vmul.f32 %v325, %v395
        %v404 = vadd.f32 %v372, %v396
        %v405 = vadd.f32 %v373, %v397
        %v406 = vadd.f32 %v374, %v398
        %v407 = vadd.f32 %v375, %v399
        %v408 = vadd.f32 %v376, %v400
        %v409 = vadd.f32 %v377, %v401
        %v410 = vadd.f32 %v378, %v402
        %v411 = vadd.f32 %v379, %v403
        %v412 = vadd.f32 %v404, %v356
        %v413 = vadd.f32 %v405, %v357
        %v414 = vadd.f32 %v406, %v358
        %v415 = vadd.f32 %v407, %v359
        %v416 = vadd.f32 %v408, %v360
        %v417 = vadd.f32 %v409, %v361
        %v418 = vadd.f32 %v410, %v362
        %v419 = vadd.f32 %v411, %v363
        %v420 = vmax.f32 %v412, -0.01
        %v421 = vmax.f32 %v413, -0.01
        %v422 = vmax.f32 %v414, -0.01
        %v423 = vmax.f32 %v415, -0.01
        %v424 = vmax.f32 %v416, -0.01
        %v425 = vmax.f32 %v417, -0.01
        %v426 = vmax.f32 %v418, -0.01
        %v427 = vmax.f32 %v419, -0.01
        %v428 = vmin.f32 %v420, 0.01
        %v429 = vmin.f32 %v421, 0.01
        %v430 = vmin.f32 %v422, 0.01
        %v431 = vmin.f32 %v423, 0.01
        %v432 = vmin.f32 %v424, 0.01
        %v433 = vmin.f32 %v425, 0.01
        %v434 = vmin.f32 %v426, 0.01
        %v435 = vmin.f32 %v427, 0.01
        %v436 = vadd.f32 %v428, %v428
        %v437 = vadd.f32 %v429, %v429
        %v438 = vadd.f32 %v430, %v430
        %v439 = vadd.f32 %v431, %v431
        %v440 = vadd.f32 %v432, %v432
        %v441 = vadd.f32 %v433, %v433
        %v442 = vadd.f32 %v434, %v434
        %v443 = vadd.f32 %v435, %v435
        %v444 = vsub.f32 %v412, %v436
        %v445 = vsub.f32 %v413, %v437
        %v446 = vsub.f32 %v414, %v438
        %v447 = vsub.f32 %v415, %v439
        %v448 = vsub.f32 %v416, %v440
        %v449 = vsub.f32 %v417, %v441
        %v450 = vsub.f32 %v418, %v442
        %v451 = vsub.f32 %v419, %v443
        %v452 = vmul.f32 %v304, %v444
        %v453 = vmul.f32 %v305, %v445
        %v454 = vmul.f32 %v306, %v446
        %v455 = vmul.f32 %v307, %v447
        %v456 = vmul.f32 %v308, %v448
        %v457 = vmul.f32 %v309, %v449
        %v458 = vmul.f32 %v310, %v450
        %v459 = vmul.f32 %v311, %v451
        %v460 = vadd.f32 %v452, %v454
        %v461 = vadd.f32 %v453, %v455
        %v462 = vadd.f32 %v460, %v456
        %v463 = vadd.f32 %v461, %v457
        %v464 = vadd.f32 %v462, %v458
        %v465 = vadd.f32 %v463, %v459
        %v466 = vsub.f32 %v338, %v464
        %v467 = vsub.f32 %v339, %v465
        %v468 = vmul.f32 %v318, %v466
        %v469 = vmul.f32 %v319, %v467
        %v470 = vmul.f32 %v320, %v466
        %v471 = vmul.f32 %v321, %v467
        %v472 = vmul.f32 %v322, %v466
        %v473 = vmul.f32 %v323, %v467
        %v474 = vmul.f32 %v324, %v466
        %v475 = vmul.f32 %v325, %v467
        %v476 = vadd.f32 %v444, %v468
        %v477 = vadd.f32 %v445, %v469
        %v478 = vadd.f32 %v446, %v470
        %v479 = vadd.f32 %v447, %v471
        %v480 = vadd.f32 %v448, %v472
        %v481 = vadd.f32 %v449, %v473
        %v482 = vadd.f32 %v450, %v474
        %v483 = vadd.f32 %v451, %v475
        %v484 = vadd.f32 %v476, %v428
        %v485 = vadd.f32 %v477, %v429
        %v486 = vadd.f32 %v478, %v430
        %v487 = vadd.f32 %v479, %v431
        %v488 = vadd.f32 %v480, %v432
        %v489 = vadd.f32 %v481, %v433
        %v490 = vadd.f32 %v482, %v434
        %v491 = vadd.f32 %v483, %v435
        %v492 = vmax.f32 %v484, -0.01
        %v493 = vmax.f32 %v485, -0.01
        %v494 = vmax.f32 %v486, -0.01
        %v495 = vmax.f32 %v487, -0.01
        %v496 = vmax.f32 %v488, -0.01
        %v497 = vmax.f32 %v489, -0.01
        %v498 = vmax.f32 %v490, -0.01
        %v499 = vmax.f32 %v491, -0.01
        %v500 = vmin.f32 %v492, 0.01
        %v501 = vmin.f32 %v493, 0.01
        %v502 = vmin.f32 %v494, 0.01
        %v503 = vmin.f32 %v495, 0.01
        %v504 = vmin.f32 %v496, 0.01
        %v505 = vmin.f32 %v497, 0.01
        %v506 = vmin.f32 %v498, 0.01
        %v507 = vmin.f32 %v499, 0.01
        %v508 = vadd.f32 %v500, %v500
        %v509 = vadd.f32 %v501, %v501
        %v510 = vadd.f32 %v502, %v502
        %v511 = vadd.f32 %v503, %v503
        %v512 = vadd.f32 %v504, %v504
        %v513 = vadd.f32 %v505, %v505
        %v514 = vadd.f32 %v506, %v506
        %v515 = vadd.f32 %v507, %v507
        %v516 = vsub.f32 %v484, %v508
        %v517 = vsub.f32 %v485, %v509
        %v518 = vsub.f32 %v486, %v510
        %v519 = vsub.f32 %v487, %v511
        %v520 = vsub.f32 %v488, %v512
        %v521 = vsub.f32 %v489, %v513
        %v522 = vsub.f32 %v490, %v514
        %v523 = vsub.f32 %v491, %v515
        %v524 = vmul.f32 %v304, %v516
        %v525 = vmul.f32 %v305, %v517
        %v526 = vmul.f32 %v306, %v518
        %v527 = vmul.f32 %v307, %v519
        %v528 = vmul.f32 %v308, %v520
        %v529 = vmul.f32 %v309, %v521
        %v530 = vmul.f32 %v310, %v522
        %v531 = vmul.f32 %v311, %v523
        %v532 = vadd.f32 %v524, %v526
        %v533 = vadd.f32 %v525, %v527
        %v534 = vadd.f32 %v532, %v528
        %v535 = vadd.f32 %v533, %v529
        %v536 = vadd.f32 %v534, %v530
        %v537 = vadd.f32 %v535, %v531
        %v538 = vsub.f32 %v338, %v536
        %v539 = vsub.f32 %v339, %v537
        %v540 = vmul.f32 %v318, %v538
        %v541 = vmul.f32 %v319, %v539
        %v542 = vmul.f32 %v320, %v538
        %v543 = vmul.f32 %v321, %v539
        %v544 = vmul.f32 %v322, %v538
        %v545 = vmul.f32 %v323, %v539
        %v546 = vmul.f32 %v324, %v538
        %v547 = vmul.f32 %v325, %v539
        %v548 = vadd.f32 %v516, %v540
        %v549 = vadd.f32 %v517, %v541
        %v550 = vadd.f32 %v518, %v542
        %v551 = vadd.f32 %v519, %v543
        %v552 = vadd.f32 %v520, %v544
        %v553 = vadd.f32 %v521, %v545
        %v554 = vadd.f32 %v522, %v546
        %v555 = vadd.f32 %v523, %v547
        %v556 = vadd.f32 %v548, %v500
        %v557 = vadd.f32 %v549, %v501
        %v558 = vadd.f32 %v550, %v502
        %v559 = vadd.f32 %v551, %v503
        %v560 = vadd.f32 %v552, %v504
        %v561 = vadd.f32 %v553, %v505
        %v562 = vadd.f32 %v554, %v506
        %v563 = vadd.f32 %v555, %v507
        %v564 = vmax.f32 %v556, -0.01
        %v565 = vmax.f32 %v557, -0.01
        %v566 = vmax.f32 %v558, -0.01
        %v567 = vmax.f32 %v559, -0.01
        %v568 = vmax.f32 %v560, -0.01
        %v569 = vmax.f32 %v561, -0.01
        %v570 = vmax.f32 %v562, -0.01
        %v571 = vmax.f32 %v563, -0.01
        %v572 = vmin.f32 %v564, 0.01
        %v573 = vmin.f32 %v565, 0.01
        %v574 = vmin.f32 %v566, 0.01
        %v575 = vmin.f32 %v567, 0.01
        %v576 = vmin.f32 %v568, 0.01
        %v577 = vmin.f32 %v569, 0.01
        %v578 = vmin.f32 %v570, 0.01
        %v579 = vmin.f32 %v571, 0.01
        %v580 = vadd.f32 %v572, %v572
        %v581 = vadd.f32 %v573, %v573
        %v582 = vadd.f32 %v574, %v574
        %v583 = vadd.f32 %v575, %v575
        %v584 = vadd.f32 %v576, %v576
        %v585 = vadd.f32 %v577, %v577
        %v586 = vadd.f32 %v578, %v578
        %v587 = vadd.f32 %v579, %v579
        %v588 = vsub.f32 %v556, %v580
        %v589 = vsub.f32 %v557, %v581
        %v590 = vsub.f32 %v558, %v582
        %v591 = vsub.f32 %v559, %v583
        %v592 = vsub.f32 %v560, %v584
        %v593 = vsub.f32 %v561, %v585
        %v594 = vsub.f32 %v562, %v586
        %v595 = vsub.f32 %v563, %v587
        %v596 = vmul.f32 %v304, %v588
        %v597 = vmul.f32 %v305, %v589
        %v598 = vmul.f32 %v306, %v590
        %v599 = vmul.f32 %v307, %v591
        %v600 = vmul.f32 %v308, %v592
        %v601 = vmul.f32 %v309, %v593
        %v602 = vmul.f32 %v310, %v594
        %v603 = vmul.f32 %v311, %v595
        %v604 = vadd.f32 %v596, %v598
        %v605 = vadd.f32 %v597, %v599
        %v606 = vadd.f32 %v604, %v600
        %v607 = vadd.f32 %v605, %v601
        %v608 = vadd.f32 %v606, %v602
        %v609 = vadd.f32 %v607, %v603
        %v610 = vsub.f32 %v338, %v608
        %v611 = vsub.f32 %v339, %v609
        %v612 = vmul.f32 %v318, %v610
        %v613 = vmul.f32 %v319, %v611
        %v614 = vmul.f32 %v320, %v610
        %v615 = vmul.f32 %v321, %v611
        %v616 = vmul.f32 %v322, %v610
        %v617 = vmul.f32 %v323, %v611
        %v618 = vmul.f32 %v324, %v610
        %v619 = vmul.f32 %v325, %v611
        %v620 = vadd.f32 %v588, %v612
        %v621 = vadd.f32 %v589, %v613
        %v622 = vadd.f32 %v590, %v614
        %v623 = vadd.f32 %v591, %v615
        %v624 = vadd.f32 %v592, %v616
        %v625 = vadd.f32 %v593, %v617
        %v626 = vadd.f32 %v594, %v618
        %v627 = vadd.f32 %v595, %v619
        %v628 = vadd.f32 %v620, %v572
        %v629 = vadd.f32 %v621, %v573
        %v630 = vadd.f32 %v622, %v574
        %v631 = vadd.f32 %v623, %v575
        %v632 = vadd.f32 %v624, %v576
        %v633 = vadd.f32 %v625, %v577
        %v634 = vadd.f32 %v626, %v578
        %v635 = vadd.f32 %v627, %v579
        %v636 = vmax.f32 %v628, -0.01
        %v637 = vmax.f32 %v629, -0.01
        %v638 = vmax.f32 %v630, -0.01
        %v639 = vmax.f32 %v631, -0.01
        %v640 = vmax.f32 %v632, -0.01
        %v641 = vmax.f32 %v633, -0.01
        %v642 = vmax.f32 %v634, -0.01
        %v643 = vmax.f32 %v635, -0.01
        %v644 = vmin.f32 %v636, 0.01
        %v645 = vmin.f32 %v637, 0.01
        %v646 = vmin.f32 %v638, 0.01
        %v647 = vmin.f32 %v639, 0.01
        %v648 = vmin.f32 %v640, 0.01
        %v649 = vmin.f32 %v641, 0.01
        %v650 = vmin.f32 %v642, 0.01
        %v651 = vmin.f32 %v643, 0.01
        %v652 = vadd.f32 %v644, %v644
        %v653 = vadd.f32 %v645, %v645
        %v654 = vadd.f32 %v646, %v646
        %v655 = vadd.f32 %v647, %v647
        %v656 = vadd.f32 %v648, %v648
        %v657 = vadd.f32 %v649, %v649
        %v658 = vadd.f32 %v650, %v650
        %v659 = vadd.f32 %v651, %v651
        %v660 = vsub.f32 %v628, %v652
        %v661 = vsub.f32 %v629, %v653
        %v662 = vsub.f32 %v630, %v654
        %v663 = vsub.f32 %v631, %v655
        %v664 = vsub.f32 %v632, %v656
        %v665 = vsub.f32 %v633, %v657
        %v666 = vsub.f32 %v634, %v658
        %v667 = vsub.f32 %v635, %v659
        %v668 = vmul.f32 %v304, %v660
        %v669 = vmul.f32 %v305, %v661
        %v670 = vmul.f32 %v306, %v662
        %v671 = vmul.f32 %v307, %v663
        %v672 = vmul.f32 %v308, %v664
        %v673 = vmul.f32 %v309, %v665
        %v674 = vmul.f32 %v310, %v666
        %v675 = vmul.f32 %v311, %v667
        %v676 = vadd.f32 %v668, %v670
        %v677 = vadd.f32 %v669, %v671
        %v678 = vadd.f32 %v676, %v672
        %v679 = vadd.f32 %v677, %v673
        %v680 = vadd.f32 %v678, %v674
        %v681 = vadd.f32 %v679, %v675
        %v682 = vsub.f32 %v338, %v680
        %v683 = vsub.f32 %v339, %v681
        %v684 = vmul.f32 %v318, %v682
        %v685 = vmul.f32 %v319, %v683
        %v686 = vmul.f32 %v320, %v682
        %v687 = vmul.f32 %v321, %v683
        %v688 = vmul.f32 %v322, %v682
        %v689 = vmul.f32 %v323, %v683
        %v690 = vmul.f32 %v324, %v682
        %v691 = vmul.f32 %v325, %v683
        %v692 = vadd.f32 %v660, %v684
        %v693 = vadd.f32 %v661, %v685
        %v694 = vadd.f32 %v662, %v686
        %v695 = vadd.f32 %v663, %v687
        %v696 = vadd.f32 %v664, %v688
        %v697 = vadd.f32 %v665, %v689
        %v698 = vadd.f32 %v666, %v690
        %v699 = vadd.f32 %v667, %v691
        %v700 = vadd.f32 %v692, %v644
        %v701 = vadd.f32 %v693, %v645
        %v702 = vadd.f32 %v694, %v646
        %v703 = vadd.f32 %v695, %v647
        %v704 = vadd.f32 %v696, %v648
        %v705 = vadd.f32 %v697, %v649
        %v706 = vadd.f32 %v698, %v650
        %v707 = vadd.f32 %v699, %v651
        %v708 = vmax.f32 %v700, -0.01
        %v709 = vmax.f32 %v701, -0.01
        %v710 = vmax.f32 %v702, -0.01
        %v711 = vmax.f32 %v703, -0.01
        %v712 = vmax.f32 %v704, -0.01
        %v713 = vmax.f32 %v705, -0.01
        %v714 = vmax.f32 %v706, -0.01
        %v715 = vmax.f32 %v707, -0.01
        %v716 = vmin.f32 %v708, 0.01
        %v717 = vmin.f32 %v709, 0.01
        %v718 = vmin.f32 %v710, 0.01
        %v719 = vmin.f32 %v711, 0.01
        %v720 = vmin.f32 %v712, 0.01
        %v721 = vmin.f32 %v713, 0.01
        %v722 = vmin.f32 %v714, 0.01
        %v723 = vmin.f32 %v715, 0.01
        %v724 = vadd.f32 %v716, %v716
        %v725 = vadd.f32 %v717, %v717
        %v726 = vadd.f32 %v718, %v718
        %v727 = vadd.f32 %v719, %v719
        %v728 = vadd.f32 %v720, %v720
        %v729 = vadd.f32 %v721, %v721
        %v730 = vadd.f32 %v722, %v722
        %v731 = vadd.f32 %v723, %v723
        %v732 = vsub.f32 %v700, %v724
        %v733 = vsub.f32 %v701, %v725
        %v734 = vsub.f32 %v702, %v726
        %v735 = vsub.f32 %v703, %v727
        %v736 = vsub.f32 %v704, %v728
        %v737 = vsub.f32 %v705, %v729
        %v738 = vsub.f32 %v706, %v730
        %v739 = vsub.f32 %v707, %v731
        %v740 = vmul.f32 %v304, %v732
        %v741 = vmul.f32 %v305, %v733
        %v742 = vmul.f32 %v306, %v734
        %v743 = vmul.f32 %v307, %v735
        %v744 = vmul.f32 %v308, %v736
        %v745 = vmul.f32 %v309, %v737
        %v746 = vmul.f32 %v310, %v738
        %v747 = vmul.f32 %v311, %v739
        %v748 = vadd.f32 %v740, %v742
        %v749 = vadd.f32 %v741, %v743
        %v750 = vadd.f32 %v748, %v744
        %v751 = vadd.f32 %v749, %v745
        %v752 = vadd.f32 %v750, %v746
        %v753 = vadd.f32 %v751, %v747
        %v754 = vsub.f32 %v338, %v752
        %v755 = vsub.f32 %v339, %v753
        %v756 = vmul.f32 %v318, %v754
        %v757 = vmul.f32 %v319, %v755
        %v758 = vmul.f32 %v320, %v754
        %v759 = vmul.f32 %v321, %v755
        %v760 = vmul.f32 %v322, %v754
        %v761 = vmul.f32 %v323, %v755
        %v762 = vmul.f32 %v324, %v754
        %v763 = vmul.f32 %v325, %v755
        %v764 = vadd.f32 %v732, %v756
        %v765 = vadd.f32 %v733, %v757
        %v766 = vadd.f32 %v734, %v758
        %v767 = vadd.f32 %v735, %v759
        %v768 = vadd.f32 %v736, %v760
        %v769 = vadd.f32 %v737, %v761
        %v770 = vadd.f32 %v738, %v762
        %v771 = vadd.f32 %v739, %v763
        %v772 = vadd.f32 %v764, %v716
        %v773 = vadd.f32 %v765, %v717
        %v774 = vadd.f32 %v766, %v718
        %v775 = vadd.f32 %v767, %v719
        %v776 = vadd.f32 %v768, %v720
        %v777 = vadd.f32 %v769, %v721
        %v778 = vadd.f32 %v770, %v722
        %v779 = vadd.f32 %v771, %v723
        %v780 = vmax.f32 %v772, -0.01
        %v781 = vmax.f32 %v773, -0.01
        %v782 = vmax.f32 %v774, -0.01
        %v783 = vmax.f32 %v775, -0.01
        %v784 = vmax.f32 %v776, -0.01
        %v785 = vmax.f32 %v777, -0.01
        %v786 = vmax.f32 %v778, -0.01
        %v787 = vmax.f32 %v779, -0.01
        %v788 = vmin.f32 %v780, 0.01
        %v789 = vmin.f32 %v781, 0.01
        %v790 = vmin.f32 %v782, 0.01
        %v791 = vmin.f32 %v783, 0.01
        %v792 = vmin.f32 %v784, 0.01
        %v793 = vmin.f32 %v785, 0.01
        %v794 = vmin.f32 %v786, 0.01
        %v795 = vmin.f32 %v787, 0.01
        %v796 = vadd.f32 %v788, %v788
        %v797 = vadd.f32 %v789, %v789
        %v798 = vadd.f32 %v790, %v790
        %v799 = vadd.f32 %v791, %v791
        %v800 = vadd.f32 %v792, %v792
        %v801 = vadd.f32 %v793, %v793
        %v802 = vadd.f32 %v794, %v794
        %v803 = vadd.f32 %v795, %v795
        %v804 = vsub.f32 %v772, %v796
        %v805 = vsub.f32 %v773, %v797
        %v806 = vsub.f32 %v774, %v798
        %v807 = vsub.f32 %v775, %v799
        %v808 = vsub.f32 %v776, %v800
        %v809 = vsub.f32 %v777, %v801
        %v810 = vsub.f32 %v778, %v802
        %v811 = vsub.f32 %v779, %v803
        %v812 = vmul.f32 %v304, %v804
        %v813 = vmul.f32 %v305, %v805
        %v814 = vmul.f32 %v306, %v806
        %v815 = vmul.f32 %v307, %v807
        %v816 = vmul.f32 %v308, %v808
        %v817 = vmul.f32 %v309, %v809
        %v818 = vmul.f32 %v310, %v810
        %v819 = vmul.f32 %v311, %v811
        %v820 = vadd.f32 %v812, %v814
        %v821 = vadd.f32 %v813, %v815
        %v822 = vadd.f32 %v820, %v816
        %v823 = vadd.f32 %v821, %v817
        %v824 = vadd.f32 %v822, %v818
        %v825 = vadd.f32 %v823, %v819
        %v826 = vsub.f32 %v338, %v824
        %v827 = vsub.f32 %v339, %v825
        %v828 = vmul.f32 %v318, %v826
        %v829 = vmul.f32 %v319, %v827
        %v830 = vmul.f32 %v320, %v826
        %v831 = vmul.f32 %v321, %v827
        %v832 = vmul.f32 %v322, %v826
        %v833 = vmul.f32 %v323, %v827
        %v834 = vmul.f32 %v324, %v826
        %v835 = vmul.f32 %v325, %v827
        %v836 = vadd.f32 %v804, %v828
        %v837 = vadd.f32 %v805, %v829
        %v838 = vadd.f32 %v806, %v830
        %v839 = vadd.f32 %v807, %v831
        %v840 = vadd.f32 %v808, %v832
        %v841 = vadd.f32 %v809, %v833
        %v842 = vadd.f32 %v810, %v834
        %v843 = vadd.f32 %v811, %v835
        %v844 = vadd.f32 %v836, %v788
        %v845 = vadd.f32 %v837, %v789
        %v846 = vadd.f32 %v838, %v790
        %v847 = vadd.f32 %v839, %v791
        %v848 = vadd.f32 %v840, %v792
        %v849 = vadd.f32 %v841, %v793
        %v850 = vadd.f32 %v842, %v794
        %v851 = vadd.f32 %v843, %v795
        %v852 = vmax.f32 %v844, -0.01
        %v853 = vmax.f32 %v845, -0.01
        %v854 = vmax.f32 %v846, -0.01
        %v855 = vmax.f32 %v847, -0.01
        %v856 = vmax.f32 %v848, -0.01
        %v857 = vmax.f32 %v849, -0.01
        %v858 = vmax.f32 %v850, -0.01
        %v859 = vmax.f32 %v851, -0.01
        %v860 = vmin.f32 %v852, 0.01
        %v861 = vmin.f32 %v853, 0.01
        %v862 = vmin.f32 %v854, 0.01
        %v863 = vmin.f32 %v855, 0.01
        %v864 = vmin.f32 %v856, 0.01
        %v865 = vmin.f32 %v857, 0.01
        %v866 = vmin.f32 %v858, 0.01
        %v867 = vmin.f32 %v859, 0.01
        %v868 = vsub.f32 %v844, %v860
        %v869 = vsub.f32 %v845, %v861
        %v870 = vsub.f32 %v846, %v862
        %v871 = vsub.f32 %v847, %v863
        %v872 = vsub.f32 %v848, %v864
        %v873 = vsub.f32 %v849, %v865
        %v874 = vsub.f32 %v850, %v866
        %v875 = vsub.f32 %v851, %v867
        %876 = vst [vmem:[%s291] sm:$0xff] %v868
        %877 = vst [vmem:[%s291 + $0x8] sm:$0xff] %v869
        %878 = vst [vmem:[%s291 + $0x10] sm:$0xff] %v870
        %879 = vst [vmem:[%s291 + $0x18] sm:$0xff] %v871
        %880 = vst [vmem:[%s291 + $0x20] sm:$0xff] %v872
        %881 = vst [vmem:[%s291 + $0x28] sm:$0xff] %v873
        %882 = vst [vmem:[%s291 + $0x30] sm:$0xff] %v874
        %883 = vst [vmem:[%s291 + $0x38] sm:$0xff] %v875
        %s884 = sand.u32 %s129, 1
        %s885 = scalar_lea.sflag [#allocation4], %s884
        %s886 = sand.u32 %s129, 1
        %s887 = smul.addr %s886, 64
        %s888 = scalar_lea.vmem [#allocation8], %s887
        // Predicated region
        $region45: #{tpu_custom_call.1} parent=31 // pred_check
          %p889 = pneg %p139
        $region46: #{tpu_custom_call.1} parent=31 // pred_check_branch
          %891 = sbr.rel (%p889) target = $region48
        $region47: #{tpu_custom_call.1} parent=31 // pred_region
          %s892 = smul.u32 2, %s28
          %s894 = ssub.s32 1024, 1024
          %895 = vsyncadd %s885, %s894
          %s896 = smul.addr %s27, 8
          %s897 = sadd.s32 %s892, %s896
          %s898 = smul.addr %s897, 128
          %s899 = scalar_lea.hbm %s3, %s898
          %s900 = sshll.u32 %s888, 4
          %s901 = int_to_ptr.vmem [resolvable:$true] %s900
          %906 = dma.vmem_to_hbm [thread:$0]  %s901, 1024, %s899, %s885, 128, 128, 8
        $region48: #{tpu_custom_call.1} parent=31 // pred_fallthru
          _
      $region32: #{tpu_custom_call.1} parent=5 // pred_fallthru
        _
      %p907 = scmp.le.s32.totalorder 2, %s18
      // Predicated region
      $region49: #{tpu_custom_call.1} parent=5 // pred_check
        %p908 = pneg %p907
      $region50: #{tpu_custom_call.1} parent=5 // pred_check_branch
        %910 = sbr.rel (%p908) target = $region52
      $region51: #{tpu_custom_call.1} parent=5 // pred_region
        %s911 = ssub.s32 %s18, 2
        // Predicated region
        $region53: #{tpu_custom_call.1} parent=51 // pred_check
          %p912 = pneg %p145
        $region54: #{tpu_custom_call.1} parent=51 // pred_check_branch
          %914 = sbr.rel (%p912) target = $region56
        $region55: #{tpu_custom_call.1} parent=51 // pred_region
          %s915 = sand.u32 %s130, 1
          %s916 = scalar_lea.sflag [#allocation4], %s915
          %s917 = sand.u32 %s130, 1
          %s918 = smul.addr %s917, 64
          %s919 = scalar_lea.vmem [#allocation8], %s918
          %920 = dma.done %s916, 1024
        $region56: #{tpu_custom_call.1} parent=51 // pred_fallthru
          _
      $region52: #{tpu_custom_call.1} parent=5 // pred_fallthru
        _
    $region6: #{tpu_custom_call.1} parent=1 // loop_footer
      %s22 = sadd.s32 1, %s18
    $region7: #{tpu_custom_call.1} parent=1 // loop_footer_branch
      %17 = sbr.rel target = $region3
    $region8: #{tpu_custom_call.1} parent=1 // loop_exit
      _
    %921 = vsyncpa [#allocation3], 1
    %s922 = scalar_lea.sflag [#allocation3], 1
    %923 = vsyncpa %s922, 1
    %924 = vsyncpa [#allocation6], 1
    %s925 = scalar_lea.sflag [#allocation6], 1
    %926 = vsyncpa %s925, 1
    %927 = vsyncpa [#allocation4], 1
    %s928 = scalar_lea.sflag [#allocation4], 1
    %929 = vsyncpa %s928, 1

</llo_original>
